<compile_context>
chip_gen: v7x
topology: tpu7x:2x2x1
jax: 0.10.0
libtpu: 0.0.40
codegen_flags: <defaults>
</compile_context>

<pallas_src>
from functools import partial

import jax
import jax.numpy as jnp
from jax.experimental import pallas as pl
from jax.experimental.pallas import tpu as pltpu


def upconv_kernel(x_ref, w_ref, shift_ref, o_ref):
    # x_ref:     (1, H+2, W+2, Cin)  bf16  zero-padded ORIGINAL-res image (resident per batch)
    # w_ref:     (9*Cin, 4*Cout)     bf16  upsample/bias/BN-folded weights,
    #                                      row = (ro*3+cp)*Cin+ci, col = a*2*Cout + b*Cout + co
    # shift_ref: (1, 4*Cout)         f32   folded conv-bias + BN shift (tiled over parities)
    # o_ref:     (1, TH, W, 4*Cout)  out   cols = (row parity a, col parity b, cout)
    _, _, wp2, cin = x_ref.shape
    w = wp2 - 2
    th = o_ref.shape[1]
    four_cout = o_ref.shape[3]

    t = pl.program_id(1)
    row_start = pl.multiple_of(t * th, th)
    # (TH+2)-row halo slab of the resident padded image (slice along a non-minor dim).
    xs = x_ref[0, pl.ds(row_start, th + 2), :, :]           # (TH+2, W+2, Cin) bf16

    # Single im2col per tile: the 9 unique (row-offset, col-offset) taps, built
    # once and concatenated along lanes (K).  Previously 12 per-tap slices/dots.
    patches = [xs[ro:ro + th, cp:cp + w, :] for ro in range(3) for cp in range(3)]
    im2col = jnp.concatenate(patches, axis=-1).reshape(th * w, 9 * cin)

    # One MXU dot per tile: K = 9*Cin, N = 4*Cout.  Both output row parities and
    # both column parities come out of one lane-dense result; no acc RMW chain.
    y = jnp.dot(im2col, w_ref[...], preferred_element_type=jnp.float32)
    y = jnp.maximum(y + shift_ref[0, :], 0.0)                # folded bias+BN, then ReLU
    o_ref[0, :, :, :] = y.reshape(th, w, four_cout).astype(o_ref.dtype)


def _fold_upconv_weights(weight_oihw, bias, gamma, beta, run_mean, run_var, eps):
    """Fold nearest-x2 upsample + conv bias + eval BatchNorm into one weight matrix.

    Returns:
      w_big:  (9*Cin, 4*Cout)  row = (ro*3 + cp)*Cin + ci   (taps on the 1-padded
              ORIGINAL-resolution image), col = a*2*Cout + b*Cout + co
              (a/b = output row/col parity).
      shift4: (4*Cout,)        per-column shift = beta + scale*(bias - run_mean).
    """
    cout, cin = weight_oihw.shape[0], weight_oihw.shape[1]
    scale = gamma / jnp.sqrt(run_var + eps)                      # (Cout,)
    shift = beta + scale * (bias - run_mean)                     # (Cout,)
    w_hwio = jnp.transpose(weight_oihw, (2, 3, 1, 0)) * scale    # (3,3,Cin,Cout), BN scale folded
    # 3x3 kernel taps that land on original-pixel offset r (resp. c) for parity a (resp. b).
    sets = [((0,), (1, 2)), ((0, 1), (2,))]
    zeros = jnp.zeros((cin, cout), w_hwio.dtype)
    k_blocks = []
    for ro in range(3):
        for cp in range(3):
            cols = []
            for a in range(2):
                r = ro - a
                for b in range(2):
                    c = cp - b
                    if 0 <= r <= 1 and 0 <= c <= 1:
                        acc = zeros
                        for ky in sets[a][r]:
                            for kx in sets[b][c]:
                                acc = acc + w_hwio[ky, kx]
                        cols.append(acc)
                    else:
                        cols.append(zeros)
            k_blocks.append(jnp.concatenate(cols, axis=1))       # (Cin, 4*Cout)
    w_big = jnp.concatenate(k_blocks, axis=0)                    # (9*Cin, 4*Cout)
    shift4 = jnp.tile(shift, 4)                                  # (4*Cout,)
    return w_big, shift4


def _pick_row_tile(h, per_row_bytes, budget_bytes):
    """Largest divisor of h whose per-tile footprint fits the VMEM budget.

    Prefers a tiling with >=2 row tiles (keeps the pipeline / both TensorCores
    fed) unless that would shrink the tile by more than 4x (e.g. prime h).
    """
    th_cap = max(1, budget_bytes // max(per_row_bytes, 1))
    divs = [d for d in range(1, h + 1) if h % d == 0]
    fitting = [d for d in divs if d <= th_cap] or [1]
    multi = [d for d in fitting if h // d >= 2]
    if multi and 4 * max(multi) >= max(fitting):
        return max(multi)
    return max(fitting)


@partial(jax.jit, static_argnames=("out_dtype",))
def up_conv_forward(x_nchw, weight_oihw, bias, gamma, beta, run_mean, run_var,
                    eps=1e-5, out_dtype=jnp.bfloat16):
    """Forward pass equivalent to the PyTorch up_conv module (BN in eval mode)."""
    N, Cin, H, W = x_nchw.shape
    Cout = weight_oihw.shape[0]

    # ---- wrapper glue (bf16 so the layout passes are half-width; jitted) ----
    # No upsampled intermediate is ever materialized: the x2 upsample lives in
    # the folded weights, only the ORIGINAL-resolution image is padded.
    x = jnp.transpose(x_nchw.astype(jnp.bfloat16), (0, 2, 3, 1))   # NCHW -> NHWC
    x_pad = jnp.pad(x, ((0, 0), (1, 1), (1, 1), (0, 0)))           # 1px zero border
    # TODO(synk): fold the NCHW->NHWC transpose / pad into the kernel (masked
    # boundary taps or a pre-zeroed VMEM scratch) to remove this input-side pass.

    w_big, shift4 = _fold_upconv_weights(weight_oihw, bias, gamma, beta,
                                         run_mean, run_var, eps)
    w_big = w_big.astype(jnp.bfloat16)
    shift4 = shift4.reshape(1, 4 * Cout).astype(jnp.float32)

    out_bytes = jnp.dtype(out_dtype).itemsize
    try:
        vmem_cap = int(pltpu.get_tpu_info().vmem_capacity_bytes)
    except Exception:
        vmem_cap = 64 * 1024 * 1024          # assume the smallest (v7x) VMEM

    # VMEM plan: image / weights / shift single-buffered, output double-buffered,
    # plus in-kernel temporaries (halo slab copy, im2col, f32 dot result, cast).
    static_bytes = ((H + 2) * (W + 2) * Cin * 2        # padded image (Buffered(1))
                    + 9 * Cin * 4 * Cout * 2           # folded weights (Buffered(1))
                    + 4 * Cout * 4)                    # shift
    per_row = (W * 4 * Cout * (2 * out_bytes + 4 + out_bytes)   # 2x out block + f32 y + cast
               + W * 9 * Cin * 2                                # im2col
               + (W + 2) * Cin * 2)                             # halo-slab slice
    budget = max(1 << 20, min(12 << 20, vmem_cap // 3 - static_bytes))
    TH = _pick_row_tile(H, per_row, budget)
    T = H // TH

    footprint = static_bytes + TH * per_row + 2 * (W + 2) * Cin * 2
    vmem_limit = int(min(max(int(1.4 * footprint), 32 * 1024 * 1024),
                         (vmem_cap * 3) // 4))

    cost = pl.CostEstimate(
        flops=2 * N * H * W * (9 * Cin) * (4 * Cout),
        transcendentals=0,
        bytes_accessed=int(x_pad.size) * 2 + int(w_big.size) * 2
        + int(shift4.size) * 4 + N * H * W * 4 * Cout * out_bytes,
    )

    out = pl.pallas_call(
        upconv_kernel,
        out_shape=jax.ShapeDtypeStruct((N, H, W, 4 * Cout), out_dtype),
        grid_spec=pltpu.PrefetchScalarGridSpec(
            num_scalar_prefetch=0,
            grid=(N, T),
            in_specs=[
                # Whole padded original-res image, resident per batch element and
                # single-buffered (its block index only changes with n).
                # TODO(synk): for very large H*W*Cin on v7x (64 MiB VMEM), switch
                # to memory_space=pl.ANY + manual halo-slab double-buffered DMA.
                pl.BlockSpec((1, H + 2, W + 2, Cin), lambda n, t: (n, 0, 0, 0),
                             pipeline_mode=pl.Buffered(1)),
                # Grid-invariant folded weights / shift: single-buffered.
                pl.BlockSpec((9 * Cin, 4 * Cout), lambda n, t: (0, 0),
                             pipeline_mode=pl.Buffered(1)),
                pl.BlockSpec((1, 4 * Cout), lambda n, t: (0, 0),
                             pipeline_mode=pl.Buffered(1)),
            ],
            out_specs=pl.BlockSpec((1, TH, W, 4 * Cout),
                                   lambda n, t: (n, t, 0, 0)),
        ),
        compiler_params=pltpu.CompilerParams(
            dimension_semantics=("parallel", "parallel"),
            vmem_limit_bytes=vmem_limit,
        ),
        cost_estimate=cost,
    )(x_pad, w_big, shift4)

    # (N, H, W, (a,b,Cout)) -> (N, Cout, 2H, 2W): one bf16 transpose pass
    # (previously an f32 pass over the same 4x-sized tensor).
    out = out.reshape(N, H, W, 2, 2, Cout)
    out = jnp.transpose(out, (0, 5, 1, 3, 2, 4))
    return out.reshape(N, Cout, 2 * H, 2 * W)


def reference_forward(x_nchw, weight_oihw, bias, gamma, beta, run_mean,
                      run_var, eps=1e-5):
    """Pure-JAX f32 reference (true module semantics) for correctness check."""
    x = jnp.transpose(x_nchw, (0, 2, 3, 1))
    x = jnp.repeat(jnp.repeat(x, 2, axis=1), 2, axis=2)
    w_hwio = jnp.transpose(weight_oihw, (2, 3, 1, 0))
    y = jax.lax.conv_general_dilated(
        x, w_hwio, window_strides=(1, 1), padding=((1, 1), (1, 1)),
        dimension_numbers=("NHWC", "HWIO", "NHWC"))
    y = y + bias
    scale = gamma / jnp.sqrt(run_var + eps)
    shift = beta - run_mean * scale
    y = y * scale + shift
    y = jnp.maximum(y, 0.0)
    return jnp.transpose(y, (0, 3, 1, 2))


if __name__ == "__main__":
    key = jax.random.PRNGKey(0)
    k_x, k_w, k_b, k_g, k_be, k_m, k_v = jax.random.split(key, 7)

    N, Cin, Cout, H, W = 2, 4, 8, 16, 16

    x = jax.random.normal(k_x, (N, Cin, H, W), dtype=jnp.float32)
    weight = jax.random.normal(k_w, (Cout, Cin, 3, 3), dtype=jnp.float32) * 0.1
    bias = jax.random.normal(k_b, (Cout,), dtype=jnp.float32) * 0.1
    gamma = 1.0 + 0.1 * jax.random.normal(k_g, (Cout,), dtype=jnp.float32)
    beta = 0.1 * jax.random.normal(k_be, (Cout,), dtype=jnp.float32)
    run_mean = 0.1 * jax.random.normal(k_m, (Cout,), dtype=jnp.float32)
    run_var = jnp.abs(jax.random.normal(k_v, (Cout,), dtype=jnp.float32)) + 0.5

    out = up_conv_forward(x, weight, bias, gamma, beta, run_mean, run_var)
    out = jax.block_until_ready(out)

    ref = reference_forward(x, weight, bias, gamma, beta, run_mean, run_var)
    assert out.shape == (N, Cout, 2 * H, 2 * W), out.shape
    # bf16 MXU operands + bf16 output -> loosened tolerance vs. the f32 reference.
    err = jnp.max(jnp.abs(out.astype(jnp.float32) - ref))
    assert jnp.allclose(out.astype(jnp.float32), ref, rtol=6e-2, atol=6e-2), float(err)

    print("KERNEL_OK")
</pallas_src>

<mosaic_0001>
module attributes {stable_mosaic.version = 11 : i64} {
  func.func @upconv_kernel(%arg0: i32, %arg1: i32, %arg2: memref<1x18x18x4xbf16, #tpu.memory_space<vmem>>, %arg3: memref<36x32xbf16, #tpu.memory_space<vmem>>, %arg4: memref<1x32xf32, #tpu.memory_space<vmem>>, %arg5: memref<1x8x16x32xbf16, #tpu.memory_space<vmem>>) attributes {dimension_semantics = [#tpu.dimension_semantics<parallel>, #tpu.dimension_semantics<parallel>], iteration_bounds = array<i64: 2, 2>, scalar_prefetch = 0 : i64, scratch_operands = 0 : i64, tpu.core_type = #tpu.core_type<tc>, window_params = [{pipeline_mode = #tpu.pipeline_mode<synchronous>, transform_indices = @transform_0, window_bounds = array<i64: 1, 18, 18, 4>}, {pipeline_mode = #tpu.pipeline_mode<synchronous>, transform_indices = @transform_1, window_bounds = array<i64: 36, 32>}, {pipeline_mode = #tpu.pipeline_mode<synchronous>, transform_indices = @transform_2, window_bounds = array<i64: 1, 32>}, {transform_indices = @transform_3, window_bounds = array<i64: 1, 8, 16, 32>}]} {
    %c8_i32 = arith.constant 8 : i32
    %0 = arith.muli %arg1, %c8_i32 : i32
    %1 = tpu.assume_multiple %0, 8 : i32
    %c0 = arith.constant 0 : index
    %2 = arith.index_cast %1 : i32 to index
    %c0_0 = arith.constant 0 : index
    %c0_1 = arith.constant 0 : index
    %3 = vector.load %arg2[%c0, %2, %c0_0, %c0_1] : memref<1x18x18x4xbf16, #tpu.memory_space<vmem>>, vector<1x10x18x4xbf16>
    %4 = vector.shape_cast %3 : vector<1x10x18x4xbf16> to vector<10x18x4xbf16>
    %5 = vector.extract_strided_slice %4 {offsets = [0, 0, 0], sizes = [8, 16, 4], strides = [1, 1, 1]} : vector<10x18x4xbf16> to vector<8x16x4xbf16>
    %6 = vector.extract_strided_slice %4 {offsets = [0, 1, 0], sizes = [8, 16, 4], strides = [1, 1, 1]} : vector<10x18x4xbf16> to vector<8x16x4xbf16>
    %7 = vector.extract_strided_slice %4 {offsets = [0, 2, 0], sizes = [8, 16, 4], strides = [1, 1, 1]} : vector<10x18x4xbf16> to vector<8x16x4xbf16>
    %8 = vector.extract_strided_slice %4 {offsets = [1, 0, 0], sizes = [8, 16, 4], strides = [1, 1, 1]} : vector<10x18x4xbf16> to vector<8x16x4xbf16>
    %9 = vector.extract_strided_slice %4 {offsets = [1, 1, 0], sizes = [8, 16, 4], strides = [1, 1, 1]} : vector<10x18x4xbf16> to vector<8x16x4xbf16>
    %10 = vector.extract_strided_slice %4 {offsets = [1, 2, 0], sizes = [8, 16, 4], strides = [1, 1, 1]} : vector<10x18x4xbf16> to vector<8x16x4xbf16>
    %11 = vector.extract_strided_slice %4 {offsets = [2, 0, 0], sizes = [8, 16, 4], strides = [1, 1, 1]} : vector<10x18x4xbf16> to vector<8x16x4xbf16>
    %12 = vector.extract_strided_slice %4 {offsets = [2, 1, 0], sizes = [8, 16, 4], strides = [1, 1, 1]} : vector<10x18x4xbf16> to vector<8x16x4xbf16>
    %13 = vector.extract_strided_slice %4 {offsets = [2, 2, 0], sizes = [8, 16, 4], strides = [1, 1, 1]} : vector<10x18x4xbf16> to vector<8x16x4xbf16>
    %14 = tpu.concatenate %5, %6, %7, %8, %9, %10, %11, %12, %13 in 2 : vector<8x16x4xbf16>, vector<8x16x4xbf16>, vector<8x16x4xbf16>, vector<8x16x4xbf16>, vector<8x16x4xbf16>, vector<8x16x4xbf16>, vector<8x16x4xbf16>, vector<8x16x4xbf16>, vector<8x16x4xbf16> -> vector<8x16x36xbf16>
    %15 = vector.shape_cast %14 : vector<8x16x36xbf16> to vector<128x36xbf16>
    %c0_2 = arith.constant 0 : index
    %c0_3 = arith.constant 0 : index
    %16 = vector.load %arg3[%c0_2, %c0_3] : memref<36x32xbf16, #tpu.memory_space<vmem>>, vector<36x32xbf16>
    %cst = arith.constant dense<0.000000e+00> : vector<128x32xf32>
    %17 = tpu.matmul %15, %16, %cst {dimension_numbers = #tpu.dot_dimension_numbers<[1], [0], [0], [1], [0, 0, 1, 1], [], []>} : vector<128x36xbf16>, vector<36x32xbf16>, vector<128x32xf32> -> vector<128x32xf32>
    %c0_4 = arith.constant 0 : index
    %c0_5 = arith.constant 0 : index
    %18 = vector.load %arg4[%c0_4, %c0_5] : memref<1x32xf32, #tpu.memory_space<vmem>>, vector<1x32xf32>
    %19 = vector.shape_cast %18 : vector<1x32xf32> to vector<32xf32>
    %20 = vector.shape_cast %19 : vector<32xf32> to vector<1x32xf32>
    %21 = vector.broadcast %20 : vector<1x32xf32> to vector<128x32xf32>
    %22 = arith.addf %17, %21 : vector<128x32xf32>
    %cst_6 = arith.constant 0.000000e+00 : f32
    %23 = vector.broadcast %cst_6 : f32 to vector<128x32xf32>
    %24 = arith.maximumf %22, %23 : vector<128x32xf32>
    %25 = vector.shape_cast %24 : vector<128x32xf32> to vector<8x16x32xf32>
    %26 = arith.truncf %25 : vector<8x16x32xf32> to vector<8x16x32xbf16>
    %c0_7 = arith.constant 0 : index
    %c0_8 = arith.constant 0 : index
    %c0_9 = arith.constant 0 : index
    %c0_10 = arith.constant 0 : index
    %27 = vector.load %arg5[%c0_7, %c0_8, %c0_9, %c0_10] : memref<1x8x16x32xbf16, #tpu.memory_space<vmem>>, vector<1x8x16x32xbf16>
    %28 = vector.shape_cast %27 : vector<1x8x16x32xbf16> to vector<8x16x32xbf16>
    %29 = vector.shape_cast %26 : vector<8x16x32xbf16> to vector<1x8x16x32xbf16>
    tpu.vector_store %arg5[%c0_7, %c0_8, %c0_9, %c0_10], %29 {strides = array<i32>} : memref<1x8x16x32xbf16, #tpu.memory_space<vmem>>, vector<1x8x16x32xbf16>,
    return
  }
  func.func @transform_0(%arg0: i32, %arg1: i32) -> (i32, i32, i32, i32) {
    %c0_i32 = arith.constant 0 : i32
    %c0_i32_0 = arith.constant 0 : i32
    %c0_i32_1 = arith.constant 0 : i32
    %c0_i32_2 = arith.constant 0 : i32
    return %arg0, %c0_i32, %c0_i32_0, %c0_i32_1 : i32, i32, i32, i32
  }
  func.func @transform_1(%arg0: i32, %arg1: i32) -> (i32, i32) {
    %c0_i32 = arith.constant 0 : i32
    %c0_i32_0 = arith.constant 0 : i32
    %c0_i32_1 = arith.constant 0 : i32
    return %c0_i32, %c0_i32_0 : i32, i32
  }
  func.func @transform_2(%arg0: i32, %arg1: i32) -> (i32, i32) {
    %c0_i32 = arith.constant 0 : i32
    %c0_i32_0 = arith.constant 0 : i32
    %c0_i32_1 = arith.constant 0 : i32
    return %c0_i32, %c0_i32_0 : i32, i32
  }
  func.func @transform_3(%arg0: i32, %arg1: i32) -> (i32, i32, i32, i32) {
    %c0_i32 = arith.constant 0 : i32
    %c0_i32_0 = arith.constant 0 : i32
    %c0_i32_1 = arith.constant 0 : i32
    return %arg0, %arg1, %c0_i32, %c0_i32_0 : i32, i32, i32, i32
  }
}

</mosaic_0001>

<llo_original>
// kernel: tile.8
$region0: #{tile.8}
  #allocation0 [shape = 's32[1]{0}', space=sflag, size = 0x4, scoped, tag = 'scoped memory for tile.8']
  %s0 = inlined_call_operand.vmem [shape: f32[8], index: 0, kind: input, shape index: {}]
  %s1 = inlined_call_operand.vmem [shape: f32[4,8], index: 1, kind: output, shape index: {}]
  // Predicated region
  $region2: #{tile.8} parent=0 // pred_check
    _
  $region3: #{tile.8} parent=0 // pred_check_branch
    %3 = sbr.rel (0) target = $region5
  $region4: #{tile.8} parent=0 // pred_region
    _
  $region5: #{tile.8} parent=0 // pred_fallthru
    _
  %v4 = vld [vmem:[%s0] ss:$0 sm:$0xff]
  %5 = vst [vmem:[%s1] sm:$0xf] %v4

// kernel: tile.9
$region0: #{tile.9}
  %s0 = inlined_call_operand.vmem [shape: f32[4,8], index: 0, kind: input, shape index: {}]
  %s1 = inlined_call_operand.vmem [shape: f32[1,32], index: 1, kind: output, shape index: {}]
  $region1: #{tile.9} parent=0
    #allocation0 [shape = 'u8[4096]{0}', space=vmem, size = 0x1000, scoped, tag = 'scoped mem for output reshape']
    #allocation1 [shape = 'u8[4096]{0}', space=vmem, size = 0x1000, scoped, tag = 'scoped mem for input reshape']
    %s3 = sshllo.u32 0, 4
    %v4 = vld [vmem:[%s0] sm:%s3]
    %5 = vst [vmem:[#allocation1] sm:%s3] %v4
    %v6 = vld [vmem:[#allocation1] sm:$0x1]
    %vm7 = vcmask 64512
    %8 = vst.msk [vmem:[#allocation0] sm:$0x1] %vm7, %v6
    %s9 = scalar_lea.vmem [#allocation1], 3
    %v10 = vld [vmem:[%s9] sm:$0x1]
    %11 = vrot.lane.b32.xlu0 %v10, 24
    %v12 = vpop.permute.xlu0 %11
    %vm13 = vcmask 261312
    %14 = vst.msk [vmem:[#allocation0] sm:$0x1] %vm13, %v12
    %s15 = scalar_lea.vmem [#allocation1], 2
    %v16 = vld [vmem:[%s15] sm:$0x1]
    %17 = vrot.lane.b32.xlu0 %v16, 16
    %v18 = vpop.permute.xlu0 %17
    %vm19 = vcmask 195712
    %20 = vst.msk [vmem:[#allocation0] sm:$0x1] %vm19, %v18
    %s21 = scalar_lea.vmem [#allocation1], 1
    %v22 = vld [vmem:[%s21] sm:$0x1]
    %23 = vrot.lane.b32.xlu0 %v22, 8
    %v24 = vpop.permute.xlu0 %23
    %vm25 = vcmask 130112
    %26 = vst.msk [vmem:[#allocation0] sm:$0x1] %vm25, %v24
    %s28 = sshllo.u32 0, 1
    %v30 = vld [vmem:[#allocation0] sm:%s28]
    %s31 = sshllo.u32 0, 1
    %32 = vst [vmem:[%s1] sm:%s31] %v30

// kernel: up_conv_forward.1
$region0: #{up_conv_forward.1}
  #allocation0 [shape = 'u32[]', space=smem, size = 0x4, offset = 0x4, fixed_abs, tag = 'smem constant byte address 0x4 - core index']
  #allocation1 [shape = 'u32[144,128]{1,0:T(1,128)}', space=vmem, size = 0x12000, scoped, tag = 'internal scratch']
  %s0 = inlined_call_operand.vmem [shape: bf16[2,18,18,4], index: 0, kind: input, shape index: {}]
  %s1 = inlined_call_operand.vmem [shape: bf16[36,32], index: 1, kind: input, shape index: {}]
  %s2 = inlined_call_operand.vmem [shape: f32[1,32], index: 2, kind: input, shape index: {}]
  %s3 = inlined_call_operand.vmem [shape: bf16[2,16,16,32], index: 3, kind: output, shape index: {}]
  %s4 = sld [smem:[#allocation0]]
  $region45: #{up_conv_forward.1} parent=0
    _
  %s6 = ssub.s32 1, %s4
  %s7 = scalar_select 0, %s6, %s4
  loop: start=0, step=1, limit=6
  $region2: #{up_conv_forward.1} parent=0 // loop_pre_header
    _
  $region3: #{up_conv_forward.1} parent=0 // loop_header
    %s9 = sphi 0, %s13
    %p10 = scmp.ge.s32.totalorder %s9, 6
    %s16 = sphi 0, %s28
    %s17 = sphi 0, %s24
    %s18 = sphi 0, %s16
    %s19 = sphi 0, %s17
    %s20 = sphi 0, %s18
    %s21 = sphi 0, %s19
    %s31 = sphi 0, %s33
    %s34 = sphi 0, %s31
    %s35 = sphi 0, %s34
    %s51 = sphi 0, %s35
    %s55 = sphi 0, %s55
    %s57 = sphi 0, %s55
    %s58 = sphi 0, %s57
    %s72 = sphi 0, %s58
    %s76 = sphi 0, %s76
    %s78 = sphi 0, %s76
    %s79 = sphi 0, %s78
    %s93 = sphi 0, %s79
    %s101 = sphi 0, %s103
    %s104 = sphi 0, %s101
    %s105 = sphi 0, %s104
    %s121 = sphi 0, %s105
  $region4: #{up_conv_forward.1} parent=0 // loop_header_branch
    %12 = sbr.rel (%p10) target = $region8
  $region5: #{up_conv_forward.1} parent=0 // loop_body
    %s14 = ssub.s32 %s9, 1
    %s15 = ssub.s32 %s9, 2
    %s22 = sadd.s32 1, %s17
    %p23 = scmp.ge.s32.totalorder %s22, 2
    %s24 = scalar_select %p23, 0, %s22
    %s25 = sadd.s32 1, %s16
    %s26 = scalar_select %p23, %s25, %s16
    %p27 = scmp.ge.s32.totalorder %s26, 2
    %s28 = scalar_select %p27, 0, %s26
    %s29 = ssub.s32 %s16, %s28
    %p30 = scmp.eq.s32.totalorder %s29, 0
    %s32 = sadd.s32 %s31, 1
    %s33 = scalar_select %p30, %s31, %s32
    %p36 = pneg %p30
    %p37 = scmp.eq.s32.totalorder %s9, 3
    %p38 = por %p36, %p37
    %p39 = scmp.ne.s32.totalorder %s31, %s34
    %p40 = scmp.eq.s32.totalorder %s9, 0
    %p41 = por %p39, %p40
    %p42 = scmp.ne.s32.totalorder %s31, %s34
    %p43 = scmp.eq.s32.totalorder %s14, 3
    %p44 = por %p42, %p43
    %p45 = scmp.ne.s32.totalorder %s34, %s35
    %p46 = scmp.eq.s32.totalorder %s14, 0
    %p47 = por %p45, %p46
    %p48 = scmp.ne.s32.totalorder %s34, %s35
    %p49 = scmp.eq.s32.totalorder %s15, 3
    %p50 = por %p48, %p49
    %p52 = scmp.ne.s32.totalorder %s35, %s51
    %p53 = scmp.eq.s32.totalorder %s15, 0
    %p54 = por %p52, %p53
    %s56 = sadd.s32 %s55, 1
    %p59 = scmp.eq.s32.totalorder %s9, 3
    %p60 = scmp.ne.s32.totalorder %s55, %s57
    %p61 = scmp.eq.s32.totalorder %s9, 0
    %p62 = por %p60, %p61
    %p63 = scmp.ne.s32.totalorder %s55, %s57
    %p64 = scmp.eq.s32.totalorder %s14, 3
    %p65 = por %p63, %p64
    %p66 = scmp.ne.s32.totalorder %s57, %s58
    %p67 = scmp.eq.s32.totalorder %s14, 0
    %p68 = por %p66, %p67
    %p69 = scmp.ne.s32.totalorder %s57, %s58
    %p70 = scmp.eq.s32.totalorder %s15, 3
    %p71 = por %p69, %p70
    %p73 = scmp.ne.s32.totalorder %s58, %s72
    %p74 = scmp.eq.s32.totalorder %s15, 0
    %p75 = por %p73, %p74
    %s77 = sadd.s32 %s76, 1
    %p80 = scmp.eq.s32.totalorder %s9, 3
    %p81 = scmp.ne.s32.totalorder %s76, %s78
    %p82 = scmp.eq.s32.totalorder %s9, 0
    %p83 = por %p81, %p82
    %p84 = scmp.ne.s32.totalorder %s76, %s78
    %p85 = scmp.eq.s32.totalorder %s14, 3
    %p86 = por %p84, %p85
    %p87 = scmp.ne.s32.totalorder %s78, %s79
    %p88 = scmp.eq.s32.totalorder %s14, 0
    %p89 = por %p87, %p88
    %p90 = scmp.ne.s32.totalorder %s78, %s79
    %p91 = scmp.eq.s32.totalorder %s15, 3
    %p92 = por %p90, %p91
    %p94 = scmp.ne.s32.totalorder %s79, %s93
    %p95 = scmp.eq.s32.totalorder %s15, 0
    %p96 = por %p94, %p95
    %s97 = ssub.s32 %s16, %s28
    %s98 = ssub.s32 %s17, %s24
    %s99 = sor.u32 %s97, %s98
    %p100 = scmp.eq.s32.totalorder %s99, 0
    %s102 = sadd.s32 %s101, 1
    %s103 = scalar_select %p100, %s101, %s102
    %p106 = pneg %p100
    %p107 = scmp.eq.s32.totalorder %s9, 3
    %p108 = por %p106, %p107
    %p109 = scmp.ne.s32.totalorder %s101, %s104
    %p110 = scmp.eq.s32.totalorder %s9, 0
    %p111 = por %p109, %p110
    %p112 = scmp.ne.s32.totalorder %s101, %s104
    %p113 = scmp.eq.s32.totalorder %s14, 3
    %p114 = por %p112, %p113
    %p115 = scmp.ne.s32.totalorder %s104, %s105
    %p116 = scmp.eq.s32.totalorder %s14, 0
    %p117 = por %p115, %p116
    %p118 = scmp.ne.s32.totalorder %s104, %s105
    %p119 = scmp.eq.s32.totalorder %s15, 3
    %p120 = por %p118, %p119
    %p122 = scmp.ne.s32.totalorder %s105, %s121
    %p123 = scmp.eq.s32.totalorder %s15, 0
    %p124 = por %p122, %p123
    %p125 = scmp.le.s32.totalorder 1, %s9
    %p126 = scmp.lt.s32.totalorder %s9, 5
    %p127 = pnand %p125, %p126
    %p128 = pneg %p127
    // Predicated region
    $region9: #{up_conv_forward.1} parent=5 // pred_check
      _
    $region10: #{up_conv_forward.1} parent=5 // pred_check_branch
      %130 = sbr.rel (%p127) target = $region12
    $region11: #{up_conv_forward.1} parent=5 // pred_region
      %s131 = ssub.s32 %s9, 1
      // Predicated region
      $region13: #{up_conv_forward.1} parent=11 // pred_check
        %p132 = pneg %p47
      $region14: #{up_conv_forward.1} parent=11 // pred_check_branch
        %134 = sbr.rel (%p132) target = $region16
      $region15: #{up_conv_forward.1} parent=11 // pred_region
        %p135 = scmp.lt.s32.totalorder %s18, 1
        %s136 = scalar_select %p135, %s18, 1
        %s137 = smul.addr %s136, 54
        %s138 = smul.addr %s137, 4
        %s139 = scalar_lea.vmem %s0, %s138
      $region16: #{up_conv_forward.1} parent=11 // pred_fallthru
        _
      // Predicated region
      $region17: #{up_conv_forward.1} parent=11 // pred_check
        %p140 = pneg %p68
      $region18: #{up_conv_forward.1} parent=11 // pred_check_branch
        %142 = sbr.rel (%p140) target = $region20
      $region19: #{up_conv_forward.1} parent=11 // pred_region
        _
      $region20: #{up_conv_forward.1} parent=11 // pred_fallthru
        _
      // Predicated region
      $region21: #{up_conv_forward.1} parent=11 // pred_check
        %p143 = pneg %p89
      $region22: #{up_conv_forward.1} parent=11 // pred_check_branch
        %145 = sbr.rel (%p143) target = $region24
      $region23: #{up_conv_forward.1} parent=11 // pred_region
        _
      $region24: #{up_conv_forward.1} parent=11 // pred_fallthru
        _
    $region12: #{up_conv_forward.1} parent=5 // pred_fallthru
      _
    %p146 = scmp.lt.s32.totalorder %s9, 4
    // Predicated region
    $region25: #{up_conv_forward.1} parent=5 // pred_check
      %p147 = pneg %p146
    $region26: #{up_conv_forward.1} parent=5 // pred_check_branch
      %149 = sbr.rel (%p147) target = $region28
    $region27: #{up_conv_forward.1} parent=5 // pred_region
      _
    $region28: #{up_conv_forward.1} parent=5 // pred_fallthru
      _
    %p150 = scmp.le.s32.totalorder 1, %s9
    %p151 = scmp.lt.s32.totalorder %s9, 5
    %p152 = pnand %p150, %p151
    %p153 = pneg %p152
    // Predicated region
    $region29: #{up_conv_forward.1} parent=5 // pred_check
      _
    $region30: #{up_conv_forward.1} parent=5 // pred_check_branch
      %155 = sbr.rel (%p152) target = $region32
    $region31: #{up_conv_forward.1} parent=5 // pred_region
      %s156 = ssub.s32 %s9, 1
      %p157 = scmp.lt.s32.totalorder %s18, 1
      %s158 = scalar_select %p157, %s18, 1
      %s159 = smul.addr %s158, 54
      %s160 = smul.addr %s159, 4
      %s161 = scalar_lea.vmem %s0, %s160
      %p162 = pneg %p47
      %p163 = pneg %p44
      %p164 = pneg %p68
      %p165 = pneg %p65
      %p166 = pneg %p89
      %p167 = pneg %p86
      %p168 = pneg %p117
      %p169 = pneg %p114
      %s170 = smul.u32 8, %s19
      %p171 = scmp.lt.s32.totalorder %s18, 1
      %s172 = scalar_select %p171, %s18, 1
      %p173 = scmp.lt.s32.totalorder %s170, 15
      %s174 = scalar_select %p173, %s170, 15
      %s175 = smul.addr %s174, 2
      %s176 = smul.addr %s172, 32
      %s177 = sadd.s32 %s175, %s176
      %s178 = smul.addr %s177, 4
      %s179 = scalar_lea.vmem %s3, %s178
      %p180 = scmp.lt.s32.totalorder %s18, 1
      %s181 = scalar_select %p180, %s18, 1
      %s182 = smul.addr %s181, 54
      %s183 = smul.addr %s182, 4
      %s184 = scalar_lea.vmem %s0, %s183
      %s185 = smul.u32 8, %s19
      %p186 = scmp.lt.s32.totalorder %s18, 1
      %s187 = scalar_select %p186, %s18, 1
      %p188 = scmp.lt.s32.totalorder %s185, 15
      %s189 = scalar_select %p188, %s185, 15
      %s190 = smul.addr %s189, 2
      %s191 = smul.addr %s187, 32
      %s192 = sadd.s32 %s190, %s191
      %s193 = smul.addr %s192, 4
      %s194 = scalar_lea.vmem %s3, %s193
      %s195 = smul.u32 8, %s19
      %s197 = smul.u32 %s19, 8
      %s198 = smul.u32 %s197, 3
      %s199 = smul.addr %s198, 4
      %s200 = scalar_lea.vmem %s184, %s199
      %v201 = vld [vmem:[%s200] sm:$0xf]
      %v202 = vld [vmem:[%s200 + $0x4] sm:$0xf]
      %v203 = vld [vmem:[%s200 + $0x8] sm:$0x1]
      %v204 = vld [vmem:[%s200 + $0xc] sm:$0xf]
      %v205 = vld [vmem:[%s200 + $0x10] sm:$0xf]
      %v206 = vld [vmem:[%s200 + $0x14] sm:$0x1]
      %v207 = vld [vmem:[%s200 + $0x18] sm:$0xf]
      %v208 = vld [vmem:[%s200 + $0x1c] sm:$0xf]
      %v209 = vld [vmem:[%s200 + $0x20] sm:$0x1]
      %v210 = vld [vmem:[%s200 + $0x24] sm:$0xf]
      %v211 = vld [vmem:[%s200 + $0x28] sm:$0xf]
      %v212 = vld [vmem:[%s200 + $0x2c] sm:$0x1]
      %v213 = vld [vmem:[%s200 + $0x30] sm:$0xf]
      %v214 = vld [vmem:[%s200 + $0x34] sm:$0xf]
      %v215 = vld [vmem:[%s200 + $0x38] sm:$0x1]
      %v216 = vld [vmem:[%s200 + $0x3c] sm:$0xf]
      %v217 = vld [vmem:[%s200 + $0x40] sm:$0xf]
      %v218 = vld [vmem:[%s200 + $0x44] sm:$0x1]
      %v219 = vld [vmem:[%s200 + $0x48] sm:$0xf]
      %v220 = vld [vmem:[%s200 + $0x4c] sm:$0xf]
      %v221 = vld [vmem:[%s200 + $0x50] sm:$0x1]
      %v222 = vld [vmem:[%s200 + $0x54] sm:$0xf]
      %v223 = vld [vmem:[%s200 + $0x58] sm:$0xf]
      %v224 = vld [vmem:[%s200 + $0x5c] sm:$0x1]
      %v225 = vld [vmem:[%s200 + $0x60] sm:$0xf]
      %v226 = vld [vmem:[%s200 + $0x64] sm:$0xf]
      %v227 = vld [vmem:[%s200 + $0x68] sm:$0x1]
      %v228 = vld [vmem:[%s200 + $0x6c] sm:$0xf]
      %v229 = vld [vmem:[%s200 + $0x70] sm:$0xf]
      %v230 = vld [vmem:[%s200 + $0x74] sm:$0x1]
      %v247 = vunpack.c.l.b16 %v201
      %v248 = vunpack.c.l.b16 %v202
      %v249 = vunpack.c.l.b16 %v204
      %v250 = vunpack.c.l.b16 %v205
      %v251 = vunpack.c.l.b16 %v207
      %v252 = vunpack.c.l.b16 %v208
      %v253 = vunpack.c.l.b16 %v210
      %v254 = vunpack.c.l.b16 %v211
      %v255 = vunpack.c.l.b16 %v213
      %v256 = vunpack.c.l.b16 %v214
      %v257 = vunpack.c.l.b16 %v216
      %v258 = vunpack.c.l.b16 %v217
      %v259 = vunpack.c.l.b16 %v219
      %v260 = vunpack.c.l.b16 %v220
      %v261 = vunpack.c.l.b16 %v222
      %v262 = vunpack.c.l.b16 %v223
      %v263 = vpack.c.b16 %v248, %v247
      %v264 = vpack.c.b16 %v250, %v249
      %v265 = vpack.c.b16 %v252, %v251
      %v266 = vpack.c.b16 %v254, %v253
      %v267 = vpack.c.b16 %v256, %v255
      %v268 = vpack.c.b16 %v258, %v257
      %v269 = vpack.c.b16 %v260, %v259
      %v270 = vpack.c.b16 %v262, %v261
      %v279 = vunpack.c.l.b16 %v203
      %v280 = vunpack.c.l.b16 %v206
      %v281 = vunpack.c.l.b16 %v209
      %v282 = vunpack.c.l.b16 %v212
      %v283 = vunpack.c.l.b16 %v215
      %v284 = vunpack.c.l.b16 %v218
      %v285 = vunpack.c.l.b16 %v221
      %v286 = vunpack.c.l.b16 %v224
      %v287 = vpack.c.b16 %v279, %v279
      %v288 = vpack.c.b16 %v280, %v280
      %v289 = vpack.c.b16 %v281, %v281
      %v290 = vpack.c.b16 %v282, %v282
      %v291 = vpack.c.b16 %v283, %v283
      %v292 = vpack.c.b16 %v284, %v284
      %v293 = vpack.c.b16 %v285, %v285
      %v294 = vpack.c.b16 %v286, %v286
      %vm295 = vsmask.f32 7424
      %v297 = vshrl.u32 %v263, 16
      %v299 = vshll.u32 %v263, 16
      %v301 = vrot.slane %v299, 1
      %v302 = vor.u32 %v297, %v301
      %v304 = vshll.u32 %v287, 16
      %v306 = vrot.slane %v304, 1
      %v307 = vsel %vm295, %v302, %v306
      %v309 = vshrl.u32 %v264, 16
      %v311 = vshll.u32 %v264, 16
      %v313 = vrot.slane %v311, 1
      %v314 = vor.u32 %v309, %v313
      %v316 = vshll.u32 %v288, 16
      %v318 = vrot.slane %v316, 1
      %v319 = vsel %vm295, %v314, %v318
      %v321 = vshrl.u32 %v265, 16
      %v323 = vshll.u32 %v265, 16
      %v325 = vrot.slane %v323, 1
      %v326 = vor.u32 %v321, %v325
      %v328 = vshll.u32 %v289, 16
      %v330 = vrot.slane %v328, 1
      %v331 = vsel %vm295, %v326, %v330
      %v333 = vshrl.u32 %v266, 16
      %v335 = vshll.u32 %v266, 16
      %v337 = vrot.slane %v335, 1
      %v338 = vor.u32 %v333, %v337
      %v340 = vshll.u32 %v290, 16
      %v342 = vrot.slane %v340, 1
      %v343 = vsel %vm295, %v338, %v342
      %v345 = vshrl.u32 %v267, 16
      %v347 = vshll.u32 %v267, 16
      %v349 = vrot.slane %v347, 1
      %v350 = vor.u32 %v345, %v349
      %v352 = vshll.u32 %v291, 16
      %v354 = vrot.slane %v352, 1
      %v355 = vsel %vm295, %v350, %v354
      %v357 = vshrl.u32 %v268, 16
      %v359 = vshll.u32 %v268, 16
      %v361 = vrot.slane %v359, 1
      %v362 = vor.u32 %v357, %v361
      %v364 = vshll.u32 %v292, 16
      %v366 = vrot.slane %v364, 1
      %v367 = vsel %vm295, %v362, %v366
      %v369 = vshrl.u32 %v269, 16
      %v371 = vshll.u32 %v269, 16
      %v373 = vrot.slane %v371, 1
      %v374 = vor.u32 %v369, %v373
      %v376 = vshll.u32 %v293, 16
      %v378 = vrot.slane %v376, 1
      %v379 = vsel %vm295, %v374, %v378
      %v381 = vshrl.u32 %v270, 16
      %v383 = vshll.u32 %v270, 16
      %v385 = vrot.slane %v383, 1
      %v386 = vor.u32 %v381, %v385
      %v388 = vshll.u32 %v294, 16
      %v390 = vrot.slane %v388, 1
      %v391 = vsel %vm295, %v386, %v390
      %392 = vrot.lane.b32.xlu0 %v307, 4
      %v393 = vpop.permute.xlu0 %392
      %394 = vrot.lane.b32.xlu0 %v319, 4
      %v395 = vpop.permute.xlu0 %394
      %396 = vrot.lane.b32.xlu0 %v331, 4
      %v397 = vpop.permute.xlu0 %396
      %398 = vrot.lane.b32.xlu0 %v343, 4
      %v399 = vpop.permute.xlu0 %398
      %400 = vrot.lane.b32.xlu0 %v355, 4
      %v401 = vpop.permute.xlu0 %400
      %402 = vrot.lane.b32.xlu0 %v367, 4
      %v403 = vpop.permute.xlu0 %402
      %404 = vrot.lane.b32.xlu0 %v379, 4
      %v405 = vpop.permute.xlu0 %404
      %406 = vrot.lane.b32.xlu0 %v391, 4
      %v407 = vpop.permute.xlu0 %406
      %vm408 = vcmask 1046528
      %v409 = vrot.slane %v263, 1
      %v410 = vrot.slane %v287, 1
      %v411 = vsel %vm408, %v409, %v410
      %v412 = vrot.slane %v264, 1
      %v413 = vrot.slane %v288, 1
      %v414 = vsel %vm408, %v412, %v413
      %v415 = vrot.slane %v265, 1
      %v416 = vrot.slane %v289, 1
      %v417 = vsel %vm408, %v415, %v416
      %v418 = vrot.slane %v266, 1
      %v419 = vrot.slane %v290, 1
      %v420 = vsel %vm408, %v418, %v419
      %v421 = vrot.slane %v267, 1
      %v422 = vrot.slane %v291, 1
      %v423 = vsel %vm408, %v421, %v422
      %v424 = vrot.slane %v268, 1
      %v425 = vrot.slane %v292, 1
      %v426 = vsel %vm408, %v424, %v425
      %v427 = vrot.slane %v269, 1
      %v428 = vrot.slane %v293, 1
      %v429 = vsel %vm408, %v427, %v428
      %v430 = vrot.slane %v270, 1
      %v431 = vrot.slane %v294, 1
      %v432 = vsel %vm408, %v430, %v431
      %433 = vrot.lane.b32.xlu0 %v411, 8
      %v434 = vpop.permute.xlu0 %433
      %435 = vrot.lane.b32.xlu0 %v414, 8
      %v436 = vpop.permute.xlu0 %435
      %437 = vrot.lane.b32.xlu0 %v417, 8
      %v438 = vpop.permute.xlu0 %437
      %439 = vrot.lane.b32.xlu0 %v420, 8
      %v440 = vpop.permute.xlu0 %439
      %441 = vrot.lane.b32.xlu0 %v423, 8
      %v442 = vpop.permute.xlu0 %441
      %443 = vrot.lane.b32.xlu0 %v426, 8
      %v444 = vpop.permute.xlu0 %443
      %445 = vrot.lane.b32.xlu0 %v429, 8
      %v446 = vpop.permute.xlu0 %445
      %447 = vrot.lane.b32.xlu0 %v432, 8
      %v448 = vpop.permute.xlu0 %447
      %v451 = vunpack.c.l.b16 %v225
      %v452 = vunpack.c.l.b16 %v226
      %v453 = vpack.c.b16 %v452, %v451
      %454 = vrot.lane.b32.xlu0 %v264, 12
      %v455 = vpop.permute.xlu0 %454
      %456 = vrot.lane.b32.xlu0 %v265, 12
      %v457 = vpop.permute.xlu0 %456
      %458 = vrot.lane.b32.xlu0 %v266, 12
      %v459 = vpop.permute.xlu0 %458
      %460 = vrot.lane.b32.xlu0 %v267, 12
      %v461 = vpop.permute.xlu0 %460
      %462 = vrot.lane.b32.xlu0 %v268, 12
      %v463 = vpop.permute.xlu0 %462
      %464 = vrot.lane.b32.xlu0 %v269, 12
      %v465 = vpop.permute.xlu0 %464
      %466 = vrot.lane.b32.xlu0 %v270, 12
      %v467 = vpop.permute.xlu0 %466
      %468 = vrot.lane.b32.xlu0 %v453, 12
      %v469 = vpop.permute.xlu0 %468
      %v471 = vunpack.c.l.b16 %v227
      %v472 = vpack.c.b16 %v471, %v471
      %v474 = vshrl.u32 %v453, 16
      %v476 = vshll.u32 %v453, 16
      %v478 = vrot.slane %v476, 1
      %v479 = vor.u32 %v474, %v478
      %v481 = vshll.u32 %v472, 16
      %v483 = vrot.slane %v481, 1
      %v484 = vsel %vm295, %v479, %v483
      %485 = vrot.lane.b32.xlu0 %v319, 16
      %v486 = vpop.permute.xlu0 %485
      %487 = vrot.lane.b32.xlu0 %v331, 16
      %v488 = vpop.permute.xlu0 %487
      %489 = vrot.lane.b32.xlu0 %v343, 16
      %v490 = vpop.permute.xlu0 %489
      %491 = vrot.lane.b32.xlu0 %v355, 16
      %v492 = vpop.permute.xlu0 %491
      %493 = vrot.lane.b32.xlu0 %v367, 16
      %v494 = vpop.permute.xlu0 %493
      %495 = vrot.lane.b32.xlu0 %v379, 16
      %v496 = vpop.permute.xlu0 %495
      %497 = vrot.lane.b32.xlu0 %v391, 16
      %v498 = vpop.permute.xlu0 %497
      %499 = vrot.lane.b32.xlu0 %v484, 16
      %v500 = vpop.permute.xlu0 %499
      %v501 = vrot.slane %v453, 1
      %v502 = vrot.slane %v472, 1
      %v503 = vsel %vm408, %v501, %v502
      %504 = vrot.lane.b32.xlu0 %v414, 20
      %v505 = vpop.permute.xlu0 %504
      %506 = vrot.lane.b32.xlu0 %v417, 20
      %v507 = vpop.permute.xlu0 %506
      %508 = vrot.lane.b32.xlu0 %v420, 20
      %v509 = vpop.permute.xlu0 %508
      %510 = vrot.lane.b32.xlu0 %v423, 20
      %v511 = vpop.permute.xlu0 %510
      %512 = vrot.lane.b32.xlu0 %v426, 20
      %v513 = vpop.permute.xlu0 %512
      %514 = vrot.lane.b32.xlu0 %v429, 20
      %v515 = vpop.permute.xlu0 %514
      %516 = vrot.lane.b32.xlu0 %v432, 20
      %v517 = vpop.permute.xlu0 %516
      %518 = vrot.lane.b32.xlu0 %v503, 20
      %v519 = vpop.permute.xlu0 %518
      %v522 = vunpack.c.l.b16 %v228
      %v523 = vunpack.c.l.b16 %v229
      %v524 = vpack.c.b16 %v523, %v522
      %525 = vrot.lane.b32.xlu0 %v265, 24
      %v526 = vpop.permute.xlu0 %525
      %527 = vrot.lane.b32.xlu0 %v266, 24
      %v528 = vpop.permute.xlu0 %527
      %529 = vrot.lane.b32.xlu0 %v267, 24
      %v530 = vpop.permute.xlu0 %529
      %531 = vrot.lane.b32.xlu0 %v268, 24
      %v532 = vpop.permute.xlu0 %531
      %533 = vrot.lane.b32.xlu0 %v269, 24
      %v534 = vpop.permute.xlu0 %533
      %535 = vrot.lane.b32.xlu0 %v270, 24
      %v536 = vpop.permute.xlu0 %535
      %537 = vrot.lane.b32.xlu0 %v453, 24
      %v538 = vpop.permute.xlu0 %537
      %539 = vrot.lane.b32.xlu0 %v524, 24
      %v540 = vpop.permute.xlu0 %539
      %v542 = vunpack.c.l.b16 %v230
      %v543 = vpack.c.b16 %v542, %v542
      %v545 = vshrl.u32 %v524, 16
      %v547 = vshll.u32 %v524, 16
      %v549 = vrot.slane %v547, 1
      %v550 = vor.u32 %v545, %v549
      %v552 = vshll.u32 %v543, 16
      %v554 = vrot.slane %v552, 1
      %v555 = vsel %vm295, %v550, %v554
      %556 = vrot.lane.b32.xlu0 %v331, 28
      %v557 = vpop.permute.xlu0 %556
      %558 = vrot.lane.b32.xlu0 %v343, 28
      %v559 = vpop.permute.xlu0 %558
      %560 = vrot.lane.b32.xlu0 %v355, 28
      %v561 = vpop.permute.xlu0 %560
      %562 = vrot.lane.b32.xlu0 %v367, 28
      %v563 = vpop.permute.xlu0 %562
      %564 = vrot.lane.b32.xlu0 %v379, 28
      %v565 = vpop.permute.xlu0 %564
      %566 = vrot.lane.b32.xlu0 %v391, 28
      %v567 = vpop.permute.xlu0 %566
      %568 = vrot.lane.b32.xlu0 %v484, 28
      %v569 = vpop.permute.xlu0 %568
      %570 = vrot.lane.b32.xlu0 %v555, 28
      %v571 = vpop.permute.xlu0 %570
      %v572 = vrot.slane %v524, 1
      %v573 = vrot.slane %v543, 1
      %v574 = vsel %vm408, %v572, %v573
      %575 = vrot.lane.b32.xlu0 %v417, 32
      %v576 = vpop.permute.xlu0 %575
      %577 = vrot.lane.b32.xlu0 %v420, 32
      %v578 = vpop.permute.xlu0 %577
      %579 = vrot.lane.b32.xlu0 %v423, 32
      %v580 = vpop.permute.xlu0 %579
      %581 = vrot.lane.b32.xlu0 %v426, 32
      %v582 = vpop.permute.xlu0 %581
      %583 = vrot.lane.b32.xlu0 %v429, 32
      %v584 = vpop.permute.xlu0 %583
      %585 = vrot.lane.b32.xlu0 %v432, 32
      %v586 = vpop.permute.xlu0 %585
      %587 = vrot.lane.b32.xlu0 %v503, 32
      %v588 = vpop.permute.xlu0 %587
      %589 = vrot.lane.b32.xlu0 %v574, 32
      %v590 = vpop.permute.xlu0 %589
      %vm591 = vcmask 31744
      %v593 = vsel %vm591, %v263, %v393
      %v595 = vsel %vm591, %v264, %v395
      %v597 = vsel %vm591, %v265, %v397
      %v599 = vsel %vm591, %v266, %v399
      %v601 = vsel %vm591, %v267, %v401
      %v603 = vsel %vm591, %v268, %v403
      %v605 = vsel %vm591, %v269, %v405
      %v607 = vsel %vm591, %v270, %v407
      %vm608 = vcmask 64512
      %v610 = vsel %vm608, %v593, %v434
      %v612 = vsel %vm608, %v595, %v436
      %v614 = vsel %vm608, %v597, %v438
      %v616 = vsel %vm608, %v599, %v440
      %v618 = vsel %vm608, %v601, %v442
      %v620 = vsel %vm608, %v603, %v444
      %v622 = vsel %vm608, %v605, %v446
      %v624 = vsel %vm608, %v607, %v448
      %vm625 = vcmask 97280
      %v627 = vsel %vm625, %v610, %v455
      %v629 = vsel %vm625, %v612, %v457
      %v631 = vsel %vm625, %v614, %v459
      %v633 = vsel %vm625, %v616, %v461
      %v635 = vsel %vm625, %v618, %v463
      %v637 = vsel %vm625, %v620, %v465
      %v639 = vsel %vm625, %v622, %v467
      %v641 = vsel %vm625, %v624, %v469
      %vm642 = vcmask 130048
      %v644 = vsel %vm642, %v627, %v486
      %v646 = vsel %vm642, %v629, %v488
      %v648 = vsel %vm642, %v631, %v490
      %v650 = vsel %vm642, %v633, %v492
      %v652 = vsel %vm642, %v635, %v494
      %v654 = vsel %vm642, %v637, %v496
      %v656 = vsel %vm642, %v639, %v498
      %v658 = vsel %vm642, %v641, %v500
      %vm659 = vcmask 162816
      %v661 = vsel %vm659, %v644, %v505
      %v663 = vsel %vm659, %v646, %v507
      %v665 = vsel %vm659, %v648, %v509
      %v667 = vsel %vm659, %v650, %v511
      %v669 = vsel %vm659, %v652, %v513
      %v671 = vsel %vm659, %v654, %v515
      %v673 = vsel %vm659, %v656, %v517
      %v675 = vsel %vm659, %v658, %v519
      %vm676 = vcmask 195584
      %v678 = vsel %vm676, %v661, %v526
      %v680 = vsel %vm676, %v663, %v528
      %v682 = vsel %vm676, %v665, %v530
      %v684 = vsel %vm676, %v667, %v532
      %v686 = vsel %vm676, %v669, %v534
      %v688 = vsel %vm676, %v671, %v536
      %v690 = vsel %vm676, %v673, %v538
      %v692 = vsel %vm676, %v675, %v540
      %vm693 = vcmask 228352
      %v695 = vsel %vm693, %v678, %v557
      %v697 = vsel %vm693, %v680, %v559
      %v699 = vsel %vm693, %v682, %v561
      %v701 = vsel %vm693, %v684, %v563
      %v703 = vsel %vm693, %v686, %v565
      %v705 = vsel %vm693, %v688, %v567
      %v707 = vsel %vm693, %v690, %v569
      %v709 = vsel %vm693, %v692, %v571
      %vm710 = vcmask 261120
      %v712 = vsel %vm710, %v695, %v576
      %v714 = vsel %vm710, %v697, %v578
      %v716 = vsel %vm710, %v699, %v580
      %v718 = vsel %vm710, %v701, %v582
      %v720 = vsel %vm710, %v703, %v584
      %v722 = vsel %vm710, %v705, %v586
      %v724 = vsel %vm710, %v707, %v588
      %v726 = vsel %vm710, %v709, %v590
      %v727 = vld [vmem:[%s1] sm:$0xf]
      %v728 = vld [vmem:[%s1 + $0x4] sm:$0xf]
      %v729 = vld [vmem:[%s1 + $0x8] sm:$0xf]
      %v730 = vld [vmem:[%s1 + $0xc] sm:$0xf]
      %v731 = vld [vmem:[%s1 + $0x10] sm:$0x3]
      %v732 = vld [vmem:[%s2] sm:$0x1]
      %v734 = vlaneseq
      %v735 = vshrl.u32 %v734, 7
      %v736 = vsub.s32 0, %v735
      %v737 = vrot.slane %v732, %v736
      %v744 = vunpack.c.l.b16 %v727
      %v745 = vunpack.c.l.b16 %v728
      %v746 = vunpack.c.l.b16 %v729
      %v747 = vunpack.c.l.b16 %v730
      %v748 = vunpack.c.l.b16 %v731
      %v749 = vpack.c.b16 %v745, %v744
      %v750 = vpack.c.b16 %v747, %v746
      %v751 = vpack.c.b16 %v748, %v748
      %vm754 = vcmask 293888
      %v755 = vsel %vm754, %v712, 0
      %v757 = vsel %vm754, %v714, 0
      %v759 = vsel %vm754, %v716, 0
      %v761 = vsel %vm754, %v718, 0
      %v763 = vsel %vm754, %v720, 0
      %v765 = vsel %vm754, %v722, 0
      %v767 = vsel %vm754, %v724, 0
      %v769 = vsel %vm754, %v726, 0
      %vm771 = vcmask 1041408
      %v773 = vsel %vm771, %v751, 0
      %775 = vmatprep.subr.bf16.mxu0 0
      %776 = vmatpush1.bf16.msra.mxu0 %v749
      %777 = vmatprep.subr.bf16.mxu0 0
      %778 = vmatpush1.bf16.msra.mxu0 %v750
      %779 = vmatprep.subr.bf16.mxu0 0
      %780 = vmatpush1.bf16.msra.mxu0 %v773
      %781 = vmatprep.subr.bf16.mxu0 0
      %782 = vmatpush1.bf16.msra.mxu0 0
      %783 = vmatprep.subr.bf16.mxu0 0
      %784 = vmatpush1.bf16.msra.mxu0 0
      %785 = vmatprep.subr.bf16.mxu0 0
      %786 = vmatpush1.bf16.msra.mxu0 0
      %787 = vmatprep.subr.bf16.mxu0 0
      %788 = vmatpush1.bf16.msra.mxu0 0
      %789 = vmatprep.subr.bf16.mxu0 0
      %790 = vmatpush1.bf16.msra.mxu0 0
      %791 = vmatprep.subr.bf16.mxu0 0
      %792 = vmatpush1.bf16.msra.mxu0 0
      %793 = vmatprep.subr.bf16.mxu0 0
      %794 = vmatpush1.bf16.msra.mxu0 0
      %795 = vmatprep.subr.bf16.mxu0 0
      %796 = vmatpush1.bf16.msra.mxu0 0
      %797 = vmatprep.subr.bf16.mxu0 0
      %798 = vmatpush1.bf16.msra.mxu0 0
      %799 = vmatprep.subr.bf16.mxu0 0
      %800 = vmatpush1.bf16.msra.mxu0 0
      %801 = vmatprep.subr.bf16.mxu0 0
      %802 = vmatpush1.bf16.msra.mxu0 0
      %803 = vmatprep.subr.bf16.mxu0 0
      %804 = vmatpush1.bf16.msra.mxu0 0
      %805 = vmatprep.subr.bf16.mxu0 0
      %806 = vmatpush1.bf16.msra.mxu0 0
      %807 = vmatprep.mubr.bf16.mxu0 0
      %808 = vmatmul.mubr.bf16.gmra.mrb[0].mxu0 %v755
      %v809 = vpop.f32.mrb[0].mxu0
      %v810 = vadd.f32 %v737, %v809
      %v811 = vpop.f32.mrb[0].mxu0
      %v812 = vpop.f32.mrb[0].mxu0
      %v813 = vadd.f32 %v737, %v812
      %v814 = vpop.f32.mrb[0].mxu0
      %815 = vmatprep.mubr.bf16.mxu0 0
      %816 = vmatmul.mubr.bf16.gmra.mrb[0].mxu0 %v757
      %v817 = vpop.f32.mrb[0].mxu0
      %v818 = vadd.f32 %v737, %v817
      %v819 = vpop.f32.mrb[0].mxu0
      %v820 = vpop.f32.mrb[0].mxu0
      %v821 = vadd.f32 %v737, %v820
      %v822 = vpop.f32.mrb[0].mxu0
      %823 = vmatprep.mubr.bf16.mxu0 0
      %824 = vmatmul.mubr.bf16.gmra.mrb[0].mxu0 %v759
      %v825 = vpop.f32.mrb[0].mxu0
      %v826 = vadd.f32 %v737, %v825
      %v827 = vpop.f32.mrb[0].mxu0
      %v828 = vpop.f32.mrb[0].mxu0
      %v829 = vadd.f32 %v737, %v828
      %v830 = vpop.f32.mrb[0].mxu0
      %831 = vmatprep.mubr.bf16.mxu0 0
      %832 = vmatmul.mubr.bf16.gmra.mrb[0].mxu0 %v761
      %v833 = vpop.f32.mrb[0].mxu0
      %v834 = vadd.f32 %v737, %v833
      %v835 = vpop.f32.mrb[0].mxu0
      %v836 = vpop.f32.mrb[0].mxu0
      %v837 = vadd.f32 %v737, %v836
      %v838 = vpop.f32.mrb[0].mxu0
      %839 = vmatprep.mubr.bf16.mxu0 0
      %840 = vmatmul.mubr.bf16.gmra.mrb[0].mxu0 %v763
      %v841 = vpop.f32.mrb[0].mxu0
      %v842 = vadd.f32 %v737, %v841
      %v843 = vpop.f32.mrb[0].mxu0
      %v844 = vpop.f32.mrb[0].mxu0
      %v845 = vadd.f32 %v737, %v844
      %v846 = vpop.f32.mrb[0].mxu0
      %847 = vmatprep.mubr.bf16.mxu0 0
      %848 = vmatmul.mubr.bf16.gmra.mrb[0].mxu0 %v765
      %v849 = vpop.f32.mrb[0].mxu0
      %v850 = vadd.f32 %v737, %v849
      %v851 = vpop.f32.mrb[0].mxu0
      %v852 = vpop.f32.mrb[0].mxu0
      %v853 = vadd.f32 %v737, %v852
      %v854 = vpop.f32.mrb[0].mxu0
      %855 = vmatprep.mubr.bf16.mxu0 0
      %856 = vmatmul.mubr.bf16.gmra.mrb[0].mxu0 %v767
      %v857 = vpop.f32.mrb[0].mxu0
      %v858 = vadd.f32 %v737, %v857
      %v859 = vpop.f32.mrb[0].mxu0
      %v860 = vpop.f32.mrb[0].mxu0
      %v861 = vadd.f32 %v737, %v860
      %v862 = vpop.f32.mrb[0].mxu0
      %863 = vmatprep.mubr.bf16.mxu0 0
      %864 = vmatmul.mubr.bf16.gmra.mrb[0].mxu0 %v769
      %v865 = vpop.f32.mrb[0].mxu0
      %v866 = vadd.f32 %v737, %v865
      %v867 = vpop.f32.mrb[0].mxu0
      %v868 = vpop.f32.mrb[0].mxu0
      %v869 = vadd.f32 %v737, %v868
      %v870 = vpop.f32.mrb[0].mxu0
      %871 = vdwg.mxu0
      %v872 = vmax.f32 %v810, 0.0
      %v873 = vmax.f32 %v813, 0.0
      %v874 = vmax.f32 %v818, 0.0
      %v875 = vmax.f32 %v821, 0.0
      %v876 = vmax.f32 %v826, 0.0
      %v877 = vmax.f32 %v829, 0.0
      %v878 = vmax.f32 %v834, 0.0
      %v879 = vmax.f32 %v837, 0.0
      %v880 = vmax.f32 %v842, 0.0
      %v881 = vmax.f32 %v845, 0.0
      %v882 = vmax.f32 %v850, 0.0
      %v883 = vmax.f32 %v853, 0.0
      %v884 = vmax.f32 %v858, 0.0
      %v885 = vmax.f32 %v861, 0.0
      %v886 = vmax.f32 %v866, 0.0
      %v887 = vmax.f32 %v869, 0.0
      %v888 = vpack.c.bf16 %v873, %v872
      %v889 = vpack.c.bf16 %v875, %v874
      %v890 = vpack.c.bf16 %v877, %v876
      %v891 = vpack.c.bf16 %v879, %v878
      %v892 = vpack.c.bf16 %v881, %v880
      %v893 = vpack.c.bf16 %v883, %v882
      %v894 = vpack.c.bf16 %v885, %v884
      %v895 = vpack.c.bf16 %v887, %v886
      %v904 = vunpack.c.l.b16 %v888
      %v905 = vunpack.c.h.b16 %v888
      %v906 = vunpack.c.l.b16 %v889
      %v907 = vunpack.c.h.b16 %v889
      %v908 = vunpack.c.l.b16 %v890
      %v909 = vunpack.c.h.b16 %v890
      %v910 = vunpack.c.l.b16 %v891
      %v911 = vunpack.c.h.b16 %v891
      %v912 = vunpack.c.l.b16 %v892
      %v913 = vunpack.c.h.b16 %v892
      %v914 = vunpack.c.l.b16 %v893
      %v915 = vunpack.c.h.b16 %v893
      %v916 = vunpack.c.l.b16 %v894
      %v917 = vunpack.c.h.b16 %v894
      %v918 = vunpack.c.l.b16 %v895
      %v919 = vunpack.c.h.b16 %v895
      %v920 = vpack.c.b16 %v904, %v904
      %v921 = vpack.c.b16 %v905, %v905
      %v922 = vpack.c.b16 %v906, %v906
      %v923 = vpack.c.b16 %v907, %v907
      %v924 = vpack.c.b16 %v908, %v908
      %v925 = vpack.c.b16 %v909, %v909
      %v926 = vpack.c.b16 %v910, %v910
      %v927 = vpack.c.b16 %v911, %v911
      %v928 = vpack.c.b16 %v912, %v912
      %v929 = vpack.c.b16 %v913, %v913
      %v930 = vpack.c.b16 %v914, %v914
      %v931 = vpack.c.b16 %v915, %v915
      %v932 = vpack.c.b16 %v916, %v916
      %v933 = vpack.c.b16 %v917, %v917
      %v934 = vpack.c.b16 %v918, %v918
      %v935 = vpack.c.b16 %v919, %v919
      %vm952 = vcmask 257024
      %953 = vst.msk [vmem:[%s194] sm:$0xf] %vm952, %v920
      %954 = vst.msk [vmem:[%s194 + $0x4] sm:$0xf] %vm952, %v921
      %955 = vst.msk [vmem:[%s194 + $0x8] sm:$0xf] %vm952, %v922
      %956 = vst.msk [vmem:[%s194 + $0xc] sm:$0xf] %vm952, %v923
      %957 = vst.msk [vmem:[%s194 + $0x10] sm:$0xf] %vm952, %v924
      %958 = vst.msk [vmem:[%s194 + $0x14] sm:$0xf] %vm952, %v925
      %959 = vst.msk [vmem:[%s194 + $0x18] sm:$0xf] %vm952, %v926
      %960 = vst.msk [vmem:[%s194 + $0x1c] sm:$0xf] %vm952, %v927
      %961 = vst.msk [vmem:[%s194 + $0x20] sm:$0xf] %vm952, %v928
      %962 = vst.msk [vmem:[%s194 + $0x24] sm:$0xf] %vm952, %v929
      %963 = vst.msk [vmem:[%s194 + $0x28] sm:$0xf] %vm952, %v930
      %964 = vst.msk [vmem:[%s194 + $0x2c] sm:$0xf] %vm952, %v931
      %965 = vst.msk [vmem:[%s194 + $0x30] sm:$0xf] %vm952, %v932
      %966 = vst.msk [vmem:[%s194 + $0x34] sm:$0xf] %vm952, %v933
      %967 = vst.msk [vmem:[%s194 + $0x38] sm:$0xf] %vm952, %v934
      %968 = vst.msk [vmem:[%s194 + $0x3c] sm:$0xf] %vm952, %v935
      %s969 = smul.u32 8, %s19
      %p970 = scmp.lt.s32.totalorder %s18, 1
      %s971 = scalar_select %p970, %s18, 1
      %p972 = scmp.lt.s32.totalorder %s969, 15
      %s973 = scalar_select %p972, %s969, 15
      %s974 = smul.addr %s973, 2
      %s975 = smul.addr %s971, 32
      %s976 = sadd.s32 %s974, %s975
      %s977 = smul.addr %s976, 4
      %s978 = scalar_lea.vmem %s3, %s977
      // Predicated region
      $region33: #{up_conv_forward.1} parent=31 // pred_check
        %p979 = pneg %p114
      $region34: #{up_conv_forward.1} parent=31 // pred_check_branch
        %981 = sbr.rel (%p979) target = $region36
      $region35: #{up_conv_forward.1} parent=31 // pred_region
        %s982 = smul.u32 8, %s19
      $region36: #{up_conv_forward.1} parent=31 // pred_fallthru
        _
    $region32: #{up_conv_forward.1} parent=5 // pred_fallthru
      _
    %p983 = scmp.le.s32.totalorder 2, %s9
    // Predicated region
    $region37: #{up_conv_forward.1} parent=5 // pred_check
      %p984 = pneg %p983
    $region38: #{up_conv_forward.1} parent=5 // pred_check_branch
      %986 = sbr.rel (%p984) target = $region40
    $region39: #{up_conv_forward.1} parent=5 // pred_region
      %s987 = ssub.s32 %s9, 2
      // Predicated region
      $region41: #{up_conv_forward.1} parent=39 // pred_check
        %p988 = pneg %p120
      $region42: #{up_conv_forward.1} parent=39 // pred_check_branch
        %990 = sbr.rel (%p988) target = $region44
      $region43: #{up_conv_forward.1} parent=39 // pred_region
        %s991 = smul.u32 8, %s21
        %p992 = scmp.lt.s32.totalorder %s20, 1
        %s993 = scalar_select %p992, %s20, 1
        %p994 = scmp.lt.s32.totalorder %s991, 15
        %s995 = scalar_select %p994, %s991, 15
        %s996 = smul.addr %s995, 2
        %s997 = smul.addr %s993, 32
        %s998 = sadd.s32 %s996, %s997
        %s999 = smul.addr %s998, 4
        %s1000 = scalar_lea.vmem %s3, %s999
      $region44: #{up_conv_forward.1} parent=39 // pred_fallthru
        _
    $region40: #{up_conv_forward.1} parent=5 // pred_fallthru
      _
  $region6: #{up_conv_forward.1} parent=0 // loop_footer
    %s13 = sadd.s32 1, %s9
  $region7: #{up_conv_forward.1} parent=0 // loop_footer_branch
    %8 = sbr.rel target = $region3
  $region8: #{up_conv_forward.1} parent=0 // loop_exit
    _

</llo_original>
